<compile_context>
chip_gen: v7x
topology: tpu7x:2x2x1
jax: 0.10.0
libtpu: 0.0.40
codegen_flags: <defaults>
</compile_context>

<pallas_src>
import math
import functools

import jax
import jax.numpy as jnp
from jax.experimental import pallas as pl
from jax.experimental.pallas import tpu as pltpu


# ----------------------------------------------------------------------------
# Helpers
# ----------------------------------------------------------------------------
def _pick_tile(dim, max_tile, align):
    """Largest tile <= max_tile that divides `dim` and is a multiple of `align`
    (falls back to multiples of 8, then to the full dimension, which is always
    a legal block)."""
    if dim <= max_tile:
        return dim
    for a in (align, 8):
        t = (max_tile // a) * a
        while t >= a:
            if dim % t == 0:
                return t
            t -= a
    return dim


# ----------------------------------------------------------------------------
# Pallas kernel 1: tiled  Y = X @ W + b  (bf16 MXU operands, f32 accumulator)
# ----------------------------------------------------------------------------
def _linear_bias_kernel(x_ref, w_ref, b_ref, o_ref, acc_ref):
    k = pl.program_id(2)

    @pl.when(k == 0)
    def _():
        # Bias hoisted into the accumulator init (done once per output tile).
        acc_ref[...] = jnp.broadcast_to(
            b_ref[...].astype(jnp.float32), acc_ref.shape)

    # bf16 operands are the native MXU format on v5e/v6e/v7x; accumulate f32.
    # Weights arrive pre-cast to bf16 (stored bf16 at init), activations are
    # cast per tile (fused with the load).
    x = x_ref[...].astype(jnp.bfloat16)
    w = w_ref[...].astype(jnp.bfloat16)
    acc_ref[...] += jnp.dot(x, w, preferred_element_type=jnp.float32)

    @pl.when(k == pl.num_programs(2) - 1)
    def _():
        o_ref[...] = acc_ref[...].astype(o_ref.dtype)


def linear_pallas(x2d, w, b, *, split_out=None, max_tm=128, max_tn=256, max_tk=512):
    """Y = x2d @ w + b.

    x2d: (M, K) f32, w: (K, N) (bf16 preferred), b: (N,) f32.
    split_out=None -> returns (M, N).
    split_out=P    -> returns (P, M, N // P): the N grid axis selects the part,
                      so a part-major [Q | K | V] weight layout comes back as
                      three contiguous (M, N//P) slabs with no wrapper slicing.
    """
    M, K = x2d.shape
    Kw, N = w.shape
    assert K == Kw and b.shape == (N,)

    tm = M if M <= max_tm else max_tm         # partial tail handled by cdiv
    tk = _pick_tile(K, max_tk, 128)           # reduction axis, must divide K

    if split_out is None:
        tn = _pick_tile(N, max_tn, 128)       # lane-dense output stores
        out_shape = jax.ShapeDtypeStruct((M, N), jnp.float32)
        out_spec = pl.BlockSpec((tm, tn), lambda i, j, k: (i, j))
    else:
        assert N % split_out == 0
        tn = N // split_out                   # one N-tile per output part
        out_shape = jax.ShapeDtypeStruct((split_out, M, tn), jnp.float32)
        out_spec = pl.BlockSpec((None, tm, tn), lambda i, j, k: (j, i, 0))

    grid = (pl.cdiv(M, tm), N // tn, K // tk)

    return pl.pallas_call(
        _linear_bias_kernel,
        out_shape=out_shape,
        grid_spec=pltpu.PrefetchScalarGridSpec(
            num_scalar_prefetch=0,
            grid=grid,
            in_specs=[
                pl.BlockSpec((tm, tk), lambda i, j, k: (i, k)),   # X tile
                pl.BlockSpec((tk, tn), lambda i, j, k: (k, j)),   # W tile (bf16)
                pl.BlockSpec((1, tn), lambda i, j, k: (0, j)),    # bias tile
            ],
            out_specs=out_spec,
            scratch_shapes=[pltpu.VMEM((tm, tn), jnp.float32)],
        ),
        compiler_params=pltpu.CompilerParams(
            dimension_semantics=("parallel", "parallel", "arbitrary"),
            vmem_limit_bytes=32 * 1024 * 1024),   # fits v7x (64 MiB) and v5e/v6e
    )(x2d, w, b.reshape(1, N))


# ----------------------------------------------------------------------------
# Pallas kernel 2: flash attention, ALL heads per step, grid (B, Qt, KVt)
# ----------------------------------------------------------------------------
def _flash_attn_kernel(q_ref, k_ref, v_ref, o_ref, m_sc, l_sc, acc_sc,
                       *, n_heads, d_k, scale):
    kv = pl.program_id(2)

    @pl.when(kv == 0)
    def _():
        m_sc[...] = jnp.full_like(m_sc, -jnp.inf)
        l_sc[...] = jnp.zeros_like(l_sc)
        acc_sc[...] = jnp.zeros_like(acc_sc)

    H, D = n_heads, d_k
    tq = q_ref.shape[0]
    tkv = k_ref.shape[0]

    # Blocks are lane-dense (rows, H*D); head split happens in VMEM.
    # Softmax scale folded into q: tq*H*D multiplies instead of H*tq*tkv.
    q = (q_ref[...] * scale).reshape(tq, H, D)
    k = k_ref[...].reshape(tkv, H, D)
    v = v_ref[...].reshape(tkv, H, D)
    qh = jnp.transpose(q, (1, 0, 2)).astype(jnp.bfloat16)    # (H, tq,  D)
    kh = jnp.transpose(k, (1, 0, 2)).astype(jnp.bfloat16)    # (H, tkv, D)
    vh = jnp.transpose(v, (1, 0, 2)).astype(jnp.bfloat16)    # (H, tkv, D)

    # Head-batched scores: bf16 MXU operands, f32 accumulation.
    s = jnp.einsum('hqd,hkd->hqk', qh, kh,
                   preferred_element_type=jnp.float32)       # (H, tq, tkv)

    # Online softmax in f32 (v5e has no bf16 VPU/EUP path).
    m_prev = m_sc[...]                                       # (H, tq, 1)
    m_new = jnp.maximum(m_prev, jnp.max(s, axis=-1, keepdims=True))
    alpha = jnp.exp(m_prev - m_new)
    p = jnp.exp(s - m_new)

    l_sc[...] = alpha * l_sc[...] + jnp.sum(p, axis=-1, keepdims=True)
    acc_sc[...] = alpha * acc_sc[...] + jnp.einsum(
        'hqk,hkd->hqd', p.astype(jnp.bfloat16), vh,
        preferred_element_type=jnp.float32)                  # (H, tq, D)
    m_sc[...] = m_new

    # TODO(synk): attn_dropout would act on the softmax weights here; identity
    # under eval-mode semantics.
    @pl.when(kv == pl.num_programs(2) - 1)
    def _():
        inv_l = pl.reciprocal(l_sc[...], approx=True)        # EUP slot, ~free
        out = acc_sc[...] * inv_l                            # (H, tq, D)
        # Emit (tq, H*D) directly: lane-dense, matches 'b h l d -> b l (h d)'.
        o_ref[...] = jnp.transpose(out, (1, 0, 2)).reshape(
            tq, H * D).astype(o_ref.dtype)


def flash_attention_pallas(qkv3, batch, seq_len, n_heads, d_k, *, scale,
                           max_tq=128, max_tkv=256):
    """qkv3: (3, B*L, H*D) f32 in part-major [Q | K | V] layout.
    Returns the attention output as a (B*L, H*D) slab."""
    three, M, HD = qkv3.shape
    assert three == 3 and M == batch * seq_len and HD == n_heads * d_k

    tq = _pick_tile(seq_len, max_tq, 8)        # small q tile: bounds s/p size
    tkv = _pick_tile(seq_len, max_tkv, 128)    # lane-dense score columns
    qb = seq_len // tq
    kb = seq_len // tkv

    kernel = functools.partial(_flash_attn_kernel,
                               n_heads=n_heads, d_k=d_k, scale=scale)
    return pl.pallas_call(
        kernel,
        out_shape=jax.ShapeDtypeStruct((M, HD), jnp.float32),
        grid_spec=pltpu.PrefetchScalarGridSpec(
            num_scalar_prefetch=0,
            grid=(batch, qb, kb),
            in_specs=[
                pl.BlockSpec((None, tq, HD),
                             lambda b, qi, ki: (0, b * qb + qi, 0)),   # Q rows
                pl.BlockSpec((None, tkv, HD),
                             lambda b, qi, ki: (1, b * kb + ki, 0)),   # K rows
                pl.BlockSpec((None, tkv, HD),
                             lambda b, qi, ki: (2, b * kb + ki, 0)),   # V rows
            ],
            out_specs=pl.BlockSpec((tq, HD),
                                   lambda b, qi, ki: (b * qb + qi, 0)),
            scratch_shapes=[
                pltpu.VMEM((n_heads, tq, 1), jnp.float32),    # running max m
                pltpu.VMEM((n_heads, tq, 1), jnp.float32),    # running denom l
                pltpu.VMEM((n_heads, tq, d_k), jnp.float32),  # output accum
            ],
        ),
        compiler_params=pltpu.CompilerParams(
            dimension_semantics=("parallel", "parallel", "arbitrary"),
            vmem_limit_bytes=32 * 1024 * 1024),
    )(qkv3, qkv3, qkv3)


# ----------------------------------------------------------------------------
# MultiHeadAttention module (eval-mode; deterministic PyTorch-style init)
# ----------------------------------------------------------------------------
class MultiHeadAttention:
    def __init__(self, n_heads, embed_dim, d_k, dropout=0.1, key=None):
        if key is None:
            key = jax.random.PRNGKey(0)
        self.n_heads, self.d_k, self.embed_dim = n_heads, d_k, embed_dim
        # TODO(synk): train-mode dropout (PyTorch RNG stream) is not reproduced;
        # both dropout layers are identity (model.eval() semantics).
        self.dropout = dropout

        H, D, E = n_heads, d_k, embed_dim
        qkv_out = 3 * H * D
        k1, k2, k3, k4 = jax.random.split(key, 4)
        bnd = 1.0 / math.sqrt(E)
        self.w_qkv = jax.random.uniform(k1, (E, qkv_out), jnp.float32, -bnd, bnd)
        self.b_qkv = jax.random.uniform(k2, (qkv_out,), jnp.float32, -bnd, bnd)
        bnd = 1.0 / math.sqrt(H * D)
        self.w_fc = jax.random.uniform(k3, (H * D, E), jnp.float32, -bnd, bnd)
        self.b_fc = jax.random.uniform(k4, (E,), jnp.float32, -bnd, bnd)

        # Kernel-side weights:
        #  * W_qkv columns permuted once from PyTorch head-major (h, qkv, d) to
        #    part-major (qkv, h, d) so the projection emits contiguous
        #    [Q | K | V] slabs of width H*D (no wrapper split/transpose),
        #  * stored in bf16 (native MXU operand; halves weight DMA).
        w_perm = self.w_qkv.reshape(E, H, 3, D).transpose(0, 2, 1, 3)
        b_perm = self.b_qkv.reshape(H, 3, D).transpose(1, 0, 2)
        self.w_qkv_kernel = w_perm.reshape(E, qkv_out).astype(jnp.bfloat16)
        self.b_qkv_kernel = b_perm.reshape(qkv_out)          # bias stays f32
        self.w_fc_kernel = self.w_fc.astype(jnp.bfloat16)
        self.b_fc_kernel = self.b_fc

    def __call__(self, X):
        B, L, E = X.shape
        H, D = self.n_heads, self.d_k

        # QKV projection -> (3, B*L, H*D): part-major output written directly
        # by the kernel's out_spec (no jnp.split / jnp.transpose round trips).
        qkv3 = linear_pallas(X.reshape(B * L, E),
                             self.w_qkv_kernel, self.b_qkv_kernel, split_out=3)

        # Fused scores + online softmax + P@V over all heads per grid step.
        attn_out = flash_attention_pallas(
            qkv3, B, L, H, D, scale=1.0 / math.sqrt(D))      # (B*L, H*D)

        # Output projection; resid_dropout = identity (eval mode).
        proj = linear_pallas(attn_out, self.w_fc_kernel, self.b_fc_kernel)
        return proj.reshape(B, L, E)


# ----------------------------------------------------------------------------
# Plain-JAX reference (f32 math at HIGHEST precision, PyTorch weight layout)
# ----------------------------------------------------------------------------
def ref_mha(X, w_qkv, b_qkv, w_fc, b_fc, n_heads, d_k):
    hi = jax.lax.Precision.HIGHEST
    B, L, E = X.shape
    qkv = jnp.dot(X.reshape(B * L, E), w_qkv, precision=hi) + b_qkv
    qkv = qkv.reshape(B, L, n_heads, 3 * d_k)
    q, k, v = jnp.split(qkv, 3, axis=-1)
    q = jnp.transpose(q, (0, 2, 1, 3))
    k = jnp.transpose(k, (0, 2, 1, 3))
    v = jnp.transpose(v, (0, 2, 1, 3))
    attn = jnp.einsum('bhqd,bhkd->bhqk', q, k, precision=hi) / math.sqrt(d_k)
    w = jax.nn.softmax(attn, axis=-1)
    out = jnp.einsum('bhqk,bhkv->bhqv', w, v, precision=hi)
    out = jnp.transpose(out, (0, 2, 1, 3)).reshape(B * L, n_heads * d_k)
    proj = jnp.dot(out, w_fc, precision=hi) + b_fc
    return proj.reshape(B, L, E)


if __name__ == "__main__":
    key = jax.random.PRNGKey(0)
    batch, seq = 2, 128
    n_heads, d_k, embed_dim = 4, 32, 128

    kx, kp = jax.random.split(key)
    X = jax.random.normal(kx, (batch, seq, embed_dim), dtype=jnp.float32)

    mha = MultiHeadAttention(n_heads, embed_dim, d_k, dropout=0.1, key=kp)
    out = mha(X)
    jax.block_until_ready(out)
    assert out.shape == (batch, seq, embed_dim)

    # Reference uses the same (bf16-rounded) weight values in f32 math, so the
    # check isolates the bf16-operand compute error of the kernels.
    ref = ref_mha(X,
                  mha.w_qkv.astype(jnp.bfloat16).astype(jnp.float32),
                  mha.b_qkv,
                  mha.w_fc.astype(jnp.bfloat16).astype(jnp.float32),
                  mha.b_fc,
                  n_heads, d_k)
    err = float(jnp.max(jnp.abs(out - ref)))
    assert jnp.allclose(out, ref, atol=3e-2, rtol=3e-2), f"max abs err = {err}"

    print("KERNEL_OK")
</pallas_src>

<mosaic_0001>
module attributes {stable_mosaic.version = 11 : i64} {
  func.func @_linear_bias_kernel(%arg0: i32, %arg1: i32, %arg2: i32, %arg3: memref<128x128xf32, #tpu.memory_space<vmem>>, %arg4: memref<128x128xbf16, #tpu.memory_space<vmem>>, %arg5: memref<1x128xf32, #tpu.memory_space<vmem>>, %arg6: memref<1x128x128xf32, #tpu.memory_space<vmem>>, %arg7: memref<128x128xf32, #tpu.memory_space<vmem>>) attributes {dimension_semantics = [#tpu.dimension_semantics<parallel>, #tpu.dimension_semantics<parallel>, #tpu.dimension_semantics<arbitrary>], iteration_bounds = array<i64: 2, 3, 1>, scalar_prefetch = 0 : i64, scratch_operands = 1 : i64, tpu.core_type = #tpu.core_type<tc>, window_params = [{transform_indices = @transform_0, window_bounds = array<i64: 128, 128>}, {transform_indices = @transform_1, window_bounds = array<i64: 128, 128>}, {transform_indices = @transform_2, window_bounds = array<i64: 1, 128>}, {transform_indices = @transform_3, window_bounds = array<i64: 1, 128, 128>}]} {
    %c0_i32 = arith.constant 0 : i32
    %0 = arith.cmpi eq, %arg2, %c0_i32 : i32
    %1 = arith.extui %0 : i1 to i32
    %c0_i32_0 = arith.constant 0 : i32
    %2 = arith.cmpi ne, %1, %c0_i32_0 : i32
    scf.if %2 {
      %c0_10 = arith.constant 0 : index
      %c0_11 = arith.constant 0 : index
      %13 = vector.load %arg5[%c0_10, %c0_11] : memref<1x128xf32, #tpu.memory_space<vmem>>, vector<1x128xf32>
      %14 = vector.shape_cast %13 : vector<1x128xf32> to vector<1x128xf32>
      %15 = vector.broadcast %14 : vector<1x128xf32> to vector<128x128xf32>
      %c0_12 = arith.constant 0 : index
      %c0_13 = arith.constant 0 : index
      %16 = vector.load %arg7[%c0_12, %c0_13] : memref<128x128xf32, #tpu.memory_space<vmem>>, vector<128x128xf32>
      tpu.vector_store %arg7[%c0_12, %c0_13], %15 {strides = array<i32>} : memref<128x128xf32, #tpu.memory_space<vmem>>, vector<128x128xf32>,
    } else {
    }
    %c0 = arith.constant 0 : index
    %c0_1 = arith.constant 0 : index
    %3 = vector.load %arg3[%c0, %c0_1] : memref<128x128xf32, #tpu.memory_space<vmem>>, vector<128x128xf32>
    %4 = arith.truncf %3 : vector<128x128xf32> to vector<128x128xbf16>
    %c0_2 = arith.constant 0 : index
    %c0_3 = arith.constant 0 : index
    %5 = vector.load %arg4[%c0_2, %c0_3] : memref<128x128xbf16, #tpu.memory_space<vmem>>, vector<128x128xbf16>
    %c0_4 = arith.constant 0 : index
    %c0_5 = arith.constant 0 : index
    %6 = vector.load %arg7[%c0_4, %c0_5] : memref<128x128xf32, #tpu.memory_space<vmem>>, vector<128x128xf32>
    %cst = arith.constant dense<0.000000e+00> : vector<128x128xf32>
    %7 = tpu.matmul %4, %5, %cst {dimension_numbers = #tpu.dot_dimension_numbers<[1], [0], [0], [1], [0, 0, 1, 1], [], []>} : vector<128x128xbf16>, vector<128x128xbf16>, vector<128x128xf32> -> vector<128x128xf32>
    %8 = arith.addf %6, %7 : vector<128x128xf32>
    %c0_6 = arith.constant 0 : index
    %c0_7 = arith.constant 0 : index
    %9 = vector.load %arg7[%c0_6, %c0_7] : memref<128x128xf32, #tpu.memory_space<vmem>>, vector<128x128xf32>
    tpu.vector_store %arg7[%c0_6, %c0_7], %8 {strides = array<i32>} : memref<128x128xf32, #tpu.memory_space<vmem>>, vector<128x128xf32>,
    %c0_i32_8 = arith.constant 0 : i32
    %10 = arith.cmpi eq, %arg2, %c0_i32_8 : i32
    %11 = arith.extui %10 : i1 to i32
    %c0_i32_9 = arith.constant 0 : i32
    %12 = arith.cmpi ne, %11, %c0_i32_9 : i32
    scf.if %12 {
      %c0_10 = arith.constant 0 : index
      %c0_11 = arith.constant 0 : index
      %13 = vector.load %arg7[%c0_10, %c0_11] : memref<128x128xf32, #tpu.memory_space<vmem>>, vector<128x128xf32>
      %c0_12 = arith.constant 0 : index
      %c0_13 = arith.constant 0 : index
      %c0_14 = arith.constant 0 : index
      %14 = vector.load %arg6[%c0_12, %c0_13, %c0_14] : memref<1x128x128xf32, #tpu.memory_space<vmem>>, vector<1x128x128xf32>
      %15 = vector.shape_cast %14 : vector<1x128x128xf32> to vector<128x128xf32>
      %16 = vector.shape_cast %13 : vector<128x128xf32> to vector<1x128x128xf32>
      tpu.vector_store %arg6[%c0_12, %c0_13, %c0_14], %16 {strides = array<i32>} : memref<1x128x128xf32, #tpu.memory_space<vmem>>, vector<1x128x128xf32>,
    } else {
    }
    return
  }
  func.func @transform_0(%arg0: i32, %arg1: i32, %arg2: i32) -> (i32, i32) {
    %c0_i32 = arith.constant 0 : i32
    return %arg0, %arg2 : i32, i32
  }
  func.func @transform_1(%arg0: i32, %arg1: i32, %arg2: i32) -> (i32, i32) {
    %c0_i32 = arith.constant 0 : i32
    return %arg2, %arg1 : i32, i32
  }
  func.func @transform_2(%arg0: i32, %arg1: i32, %arg2: i32) -> (i32, i32) {
    %c0_i32 = arith.constant 0 : i32
    %c0_i32_0 = arith.constant 0 : i32
    return %c0_i32, %arg1 : i32, i32
  }
  func.func @transform_3(%arg0: i32, %arg1: i32, %arg2: i32) -> (i32, i32, i32) {
    %c0_i32 = arith.constant 0 : i32
    %c0_i32_0 = arith.constant 0 : i32
    return %arg1, %arg0, %c0_i32 : i32, i32, i32
  }
}

</mosaic_0001>

<llo_original>
// kernel: tpu_custom_call.1
$region0: #{tpu_custom_call.1}
  #allocation0 [shape = 'u32[]', space=smem, size = 0x4, offset = 0x4, fixed_abs, tag = 'smem constant byte address 0x4 - core index']
  #allocation1 [shape = 'u32[144,128]{1,0:T(1,128)}', space=vmem, size = 0x12000, scoped, tag = 'internal scratch']
  #allocation2 [shape = 'f32[128,128]{1,0:T(8,128)}', space=vmem, size = 0x10000, scoped, tag = 'scratch operand']
  %s0 = inlined_call_operand.hbm [shape: f32[256,128], index: 0, kind: input, shape index: {}]
  %s1 = inlined_call_operand.hbm [shape: bf16[128,384], index: 1, kind: input, shape index: {}]
  %s2 = inlined_call_operand.vmem [shape: f32[1,384], index: 2, kind: input, shape index: {}]
  %s3 = inlined_call_operand.hbm [shape: f32[3,256,128], index: 3, kind: output, shape index: {}]
  %s4 = sld [smem:[#allocation0]]
  $region61: #{tpu_custom_call.1} parent=0
    _
  %s6 = ssub.s32 1, %s4
  %s7 = scalar_select 0, %s6, %s4
  $region1: #{tpu_custom_call.1} parent=0
    #allocation3 [shape = 'u8[131072]{0}', space=vmem, size = 0x20000, scoped, tag = 'input window, operand 0']
    #allocation4 [shape = 's32[2]{0}', space=sflag, size = 0x8, scoped, tag = 'scoped memory for tpu_custom_call.1']
    #allocation5 [shape = 's32[2]{0}', space=sflag, size = 0x8, scoped, tag = 'scoped memory for tpu_custom_call.1']
    #allocation6 [shape = 'u8[65536]{0}', space=vmem, size = 0x10000, scoped, tag = 'input window, operand 1']
    #allocation7 [shape = 's32[2]{0}', space=sflag, size = 0x8, scoped, tag = 'scoped memory for tpu_custom_call.1']
    #allocation8 [shape = 'u8[131072]{0}', space=vmem, size = 0x20000, scoped, tag = 'output window, operand 0']
    %8 = vsyncpa [#allocation4], 0
    %s9 = scalar_lea.sflag [#allocation4], 1
    %10 = vsyncpa %s9, 0
    %11 = vsyncpa [#allocation7], 0
    %s12 = scalar_lea.sflag [#allocation7], 1
    %13 = vsyncpa %s12, 0
    %14 = vsyncpa [#allocation5], 0
    %s15 = scalar_lea.sflag [#allocation5], 1
    %16 = vsyncpa %s15, 0
    loop: start=0, step=1, limit=8
    $region2: #{tpu_custom_call.1} parent=1 // loop_pre_header
      _
    $region3: #{tpu_custom_call.1} parent=1 // loop_header
      %s18 = sphi 0, %s22
      %p19 = scmp.ge.s32.totalorder %s18, 8
      %s25 = sphi 0, %s44
      %s26 = sphi 0, %s40
      %s27 = sphi 0, %s36
      %s28 = sphi 0, %s25
      %s29 = sphi 0, %s26
      %s30 = sphi 0, %s27
      %s31 = sphi 0, %s28
      %s32 = sphi 0, %s29
      %s33 = sphi 0, %s30
      %s49 = sphi 0, %s51
      %s52 = sphi 0, %s49
      %s53 = sphi 0, %s52
      %s69 = sphi 0, %s53
      %s77 = sphi 0, %s79
      %s80 = sphi 0, %s77
      %s81 = sphi 0, %s80
      %s97 = sphi 0, %s81
      %s103 = sphi 0, %s105
      %s106 = sphi 0, %s103
      %s107 = sphi 0, %s106
      %s123 = sphi 0, %s107
      %s131 = sphi 0, %s133
      %s134 = sphi 0, %s131
      %s135 = sphi 0, %s134
      %s151 = sphi 0, %s135
    $region4: #{tpu_custom_call.1} parent=1 // loop_header_branch
      %21 = sbr.rel (%p19) target = $region8
    $region5: #{tpu_custom_call.1} parent=1 // loop_body
      %s23 = ssub.s32 %s18, 1
      %s24 = ssub.s32 %s18, 2
      %s34 = sadd.s32 1, %s27
      %p35 = scmp.ge.s32.totalorder %s34, 1
      %s36 = scalar_select %p35, 0, %s34
      %s37 = sadd.s32 1, %s26
      %s38 = scalar_select %p35, %s37, %s26
      %p39 = scmp.ge.s32.totalorder %s38, 3
      %s40 = scalar_select %p39, 0, %s38
      %s41 = sadd.s32 1, %s25
      %s42 = scalar_select %p39, %s41, %s25
      %p43 = scmp.ge.s32.totalorder %s42, 2
      %s44 = scalar_select %p43, 0, %s42
      %s45 = ssub.s32 %s25, %s44
      %s46 = ssub.s32 %s27, %s36
      %s47 = sor.u32 %s45, %s46
      %p48 = scmp.eq.s32.totalorder %s47, 0
      %s50 = sadd.s32 %s49, 1
      %s51 = scalar_select %p48, %s49, %s50
      %p54 = pneg %p48
      %p55 = scmp.eq.s32.totalorder %s18, 5
      %p56 = por %p54, %p55
      %p57 = scmp.ne.s32.totalorder %s49, %s52
      %p58 = scmp.eq.s32.totalorder %s18, 0
      %p59 = por %p57, %p58
      %p60 = scmp.ne.s32.totalorder %s49, %s52
      %p61 = scmp.eq.s32.totalorder %s23, 5
      %p62 = por %p60, %p61
      %p63 = scmp.ne.s32.totalorder %s52, %s53
      %p64 = scmp.eq.s32.totalorder %s23, 0
      %p65 = por %p63, %p64
      %p66 = scmp.ne.s32.totalorder %s52, %s53
      %p67 = scmp.eq.s32.totalorder %s24, 5
      %p68 = por %p66, %p67
      %p70 = scmp.ne.s32.totalorder %s53, %s69
      %p71 = scmp.eq.s32.totalorder %s24, 0
      %p72 = por %p70, %p71
      %s73 = ssub.s32 %s27, %s36
      %s74 = ssub.s32 %s26, %s40
      %s75 = sor.u32 %s73, %s74
      %p76 = scmp.eq.s32.totalorder %s75, 0
      %s78 = sadd.s32 %s77, 1
      %s79 = scalar_select %p76, %s77, %s78
      %p82 = pneg %p76
      %p83 = scmp.eq.s32.totalorder %s18, 5
      %p84 = por %p82, %p83
      %p85 = scmp.ne.s32.totalorder %s77, %s80
      %p86 = scmp.eq.s32.totalorder %s18, 0
      %p87 = por %p85, %p86
      %p88 = scmp.ne.s32.totalorder %s77, %s80
      %p89 = scmp.eq.s32.totalorder %s23, 5
      %p90 = por %p88, %p89
      %p91 = scmp.ne.s32.totalorder %s80, %s81
      %p92 = scmp.eq.s32.totalorder %s23, 0
      %p93 = por %p91, %p92
      %p94 = scmp.ne.s32.totalorder %s80, %s81
      %p95 = scmp.eq.s32.totalorder %s24, 5
      %p96 = por %p94, %p95
      %p98 = scmp.ne.s32.totalorder %s81, %s97
      %p99 = scmp.eq.s32.totalorder %s24, 0
      %p100 = por %p98, %p99
      %s101 = ssub.s32 %s26, %s40
      %p102 = scmp.eq.s32.totalorder %s101, 0
      %s104 = sadd.s32 %s103, 1
      %s105 = scalar_select %p102, %s103, %s104
      %p108 = pneg %p102
      %p109 = scmp.eq.s32.totalorder %s18, 5
      %p110 = por %p108, %p109
      %p111 = scmp.ne.s32.totalorder %s103, %s106
      %p112 = scmp.eq.s32.totalorder %s18, 0
      %p113 = por %p111, %p112
      %p114 = scmp.ne.s32.totalorder %s103, %s106
      %p115 = scmp.eq.s32.totalorder %s23, 5
      %p116 = por %p114, %p115
      %p117 = scmp.ne.s32.totalorder %s106, %s107
      %p118 = scmp.eq.s32.totalorder %s23, 0
      %p119 = por %p117, %p118
      %p120 = scmp.ne.s32.totalorder %s106, %s107
      %p121 = scmp.eq.s32.totalorder %s24, 5
      %p122 = por %p120, %p121
      %p124 = scmp.ne.s32.totalorder %s107, %s123
      %p125 = scmp.eq.s32.totalorder %s24, 0
      %p126 = por %p124, %p125
      %s127 = ssub.s32 %s26, %s40
      %s128 = ssub.s32 %s25, %s44
      %s129 = sor.u32 %s127, %s128
      %p130 = scmp.eq.s32.totalorder %s129, 0
      %s132 = sadd.s32 %s131, 1
      %s133 = scalar_select %p130, %s131, %s132
      %p136 = pneg %p130
      %p137 = scmp.eq.s32.totalorder %s18, 5
      %p138 = por %p136, %p137
      %p139 = scmp.ne.s32.totalorder %s131, %s134
      %p140 = scmp.eq.s32.totalorder %s18, 0
      %p141 = por %p139, %p140
      %p142 = scmp.ne.s32.totalorder %s131, %s134
      %p143 = scmp.eq.s32.totalorder %s23, 5
      %p144 = por %p142, %p143
      %p145 = scmp.ne.s32.totalorder %s134, %s135
      %p146 = scmp.eq.s32.totalorder %s23, 0
      %p147 = por %p145, %p146
      %p148 = scmp.ne.s32.totalorder %s134, %s135
      %p149 = scmp.eq.s32.totalorder %s24, 5
      %p150 = por %p148, %p149
      %p152 = scmp.ne.s32.totalorder %s135, %s151
      %p153 = scmp.eq.s32.totalorder %s24, 0
      %p154 = por %p152, %p153
      %p155 = scmp.le.s32.totalorder 1, %s18
      %p156 = scmp.lt.s32.totalorder %s18, 7
      %p157 = pnand %p155, %p156
      %p158 = pneg %p157
      // Predicated region
      $region9: #{tpu_custom_call.1} parent=5 // pred_check
        _
      $region10: #{tpu_custom_call.1} parent=5 // pred_check_branch
        %160 = sbr.rel (%p157) target = $region12
      $region11: #{tpu_custom_call.1} parent=5 // pred_region
        %s161 = ssub.s32 %s18, 1
      $region12: #{tpu_custom_call.1} parent=5 // pred_fallthru
        _
      %p162 = scmp.lt.s32.totalorder %s18, 6
      // Predicated region
      $region13: #{tpu_custom_call.1} parent=5 // pred_check
        %p163 = pneg %p162
      $region14: #{tpu_custom_call.1} parent=5 // pred_check_branch
        %165 = sbr.rel (%p163) target = $region16
      $region15: #{tpu_custom_call.1} parent=5 // pred_region
        // Predicated region
        $region17: #{tpu_custom_call.1} parent=15 // pred_check
          %p166 = pneg %p59
        $region18: #{tpu_custom_call.1} parent=15 // pred_check_branch
          %168 = sbr.rel (%p166) target = $region20
        $region19: #{tpu_custom_call.1} parent=15 // pred_region
          %s169 = sand.u32 %s49, 1
          %s170 = scalar_lea.sflag [#allocation4], %s169
          %s171 = sand.u32 %s49, 1
          %s172 = smul.addr %s171, 128
          %s173 = scalar_lea.vmem [#allocation3], %s172
          %s174 = smul.u32 16, %s25
          %s176 = ssub.s32 2048, 2048
          %177 = vsyncadd %s170, %s176
          %s178 = sadd.s32 %s27, %s174
          %s179 = smul.addr %s178, 128
          %s180 = scalar_lea.hbm %s0, %s179
          %s181 = sshll.u32 %s173, 4
          %s182 = int_to_ptr.vmem [resolvable:$true] %s181
          %187 = dma.hbm_to_vmem [thread:$0]  %s180, 2048, %s182, %s170, 128, 128, 8
        $region20: #{tpu_custom_call.1} parent=15 // pred_fallthru
          _
        // Predicated region
        $region21: #{tpu_custom_call.1} parent=15 // pred_check
          %p188 = pneg %p87
        $region22: #{tpu_custom_call.1} parent=15 // pred_check_branch
          %190 = sbr.rel (%p188) target = $region24
        $region23: #{tpu_custom_call.1} parent=15 // pred_region
          %s191 = sand.u32 %s77, 1
          %s192 = scalar_lea.sflag [#allocation7], %s191
          %s193 = sand.u32 %s77, 1
          %s194 = smul.addr %s193, 64
          %s195 = scalar_lea.vmem [#allocation6], %s194
          %s196 = smul.u32 16, %s27
          %s198 = ssub.s32 1024, 1024
          %199 = vsyncadd %s192, %s198
          %s200 = smul.addr %s196, 3
          %s201 = sadd.s32 %s26, %s200
          %s202 = smul.addr %s201, 64
          %s203 = scalar_lea.hbm %s1, %s202
          %s204 = sshll.u32 %s195, 4
          %s205 = int_to_ptr.vmem [resolvable:$true] %s204
          %210 = dma.hbm_to_vmem [thread:$0]  %s203, 1024, %s205, %s192, 192, 64, 4
        $region24: #{tpu_custom_call.1} parent=15 // pred_fallthru
          _
        // Predicated region
        $region25: #{tpu_custom_call.1} parent=15 // pred_check
          %p211 = pneg %p113
        $region26: #{tpu_custom_call.1} parent=15 // pred_check_branch
          %213 = sbr.rel (%p211) target = $region28
        $region27: #{tpu_custom_call.1} parent=15 // pred_region
          %p214 = scmp.lt.s32.totalorder %s26, 2
          %s215 = scalar_select %p214, %s26, 2
          %s216 = scalar_lea.vmem %s2, %s215
        $region28: #{tpu_custom_call.1} parent=15 // pred_fallthru
          _
      $region16: #{tpu_custom_call.1} parent=5 // pred_fallthru
        _
      %p217 = scmp.le.s32.totalorder 1, %s18
      %p218 = scmp.lt.s32.totalorder %s18, 7
      %p219 = pnand %p217, %p218
      %p220 = pneg %p219
      // Predicated region
      $region29: #{tpu_custom_call.1} parent=5 // pred_check
        _
      $region30: #{tpu_custom_call.1} parent=5 // pred_check_branch
        %222 = sbr.rel (%p219) target = $region32
      $region31: #{tpu_custom_call.1} parent=5 // pred_region
        %s223 = ssub.s32 %s18, 1
        %s224 = sand.u32 %s52, 1
        %s225 = scalar_lea.sflag [#allocation4], %s224
        %s226 = sand.u32 %s52, 1
        %s227 = smul.addr %s226, 128
        %s228 = scalar_lea.vmem [#allocation3], %s227
        // Predicated region
        $region33: #{tpu_custom_call.1} parent=31 // pred_check
          %p229 = pneg %p65
        $region34: #{tpu_custom_call.1} parent=31 // pred_check_branch
          %231 = sbr.rel (%p229) target = $region36
        $region35: #{tpu_custom_call.1} parent=31 // pred_region
          %232 = dma.done %s225, 2048
        $region36: #{tpu_custom_call.1} parent=31 // pred_fallthru
          _
        %s233 = sand.u32 %s80, 1
        %s234 = scalar_lea.sflag [#allocation7], %s233
        %s235 = sand.u32 %s80, 1
        %s236 = smul.addr %s235, 64
        %s237 = scalar_lea.vmem [#allocation6], %s236
        // Predicated region
        $region37: #{tpu_custom_call.1} parent=31 // pred_check
          %p238 = pneg %p93
        $region38: #{tpu_custom_call.1} parent=31 // pred_check_branch
          %240 = sbr.rel (%p238) target = $region40
        $region39: #{tpu_custom_call.1} parent=31 // pred_region
          %241 = dma.done %s234, 1024
        $region40: #{tpu_custom_call.1} parent=31 // pred_fallthru
          _
        %s242 = sand.u32 %s52, 1
        %s243 = scalar_lea.sflag [#allocation4], %s242
        %s244 = sand.u32 %s52, 1
        %s245 = smul.addr %s244, 128
        %s246 = scalar_lea.vmem [#allocation3], %s245
        %p247 = pneg %p65
        %p248 = pneg %p62
        %s249 = sand.u32 %s80, 1
        %s250 = scalar_lea.sflag [#allocation7], %s249
        %s251 = sand.u32 %s80, 1
        %s252 = smul.addr %s251, 64
        %s253 = scalar_lea.vmem [#allocation6], %s252
        %p254 = pneg %p93
        %p255 = pneg %p90
        %p256 = scmp.lt.s32.totalorder %s29, 2
        %s257 = scalar_select %p256, %s29, 2
        %s258 = scalar_lea.vmem %s2, %s257
        %p259 = pneg %p119
        %p260 = pneg %p116
        %p261 = pneg %p147
        %p262 = pneg %p144
        %s263 = sand.u32 %s134, 1
        %s264 = scalar_lea.sflag [#allocation5], %s263
        %s265 = sand.u32 %s134, 1
        %s266 = smul.addr %s265, 128
        %s267 = scalar_lea.vmem [#allocation8], %s266
        %s268 = smul.u32 16, %s28
        %s269 = smul.u32 16, %s30
        %p270 = scmp.lt.s32.totalorder %s29, 2
        %s271 = scalar_select %p270, %s29, 2
        %s272 = scalar_lea.vmem %s2, %s271
        %s273 = smul.u32 16, %s28
        %p275 = scmp.eq.s32.totalorder %s30, 0
        // Predicated region
        $region41: #{tpu_custom_call.1} parent=31 // pred_check
          %p276 = pneg %p275
        $region42: #{tpu_custom_call.1} parent=31 // pred_check_branch
          %278 = sbr.rel (%p276) target = $region44
        $region43: #{tpu_custom_call.1} parent=31 // pred_region
          %v279 = vld [vmem:[%s272] sm:$0x1]
          %v281 = vlaneseq
          %v282 = vshrl.u32 %v281, 7
          %v283 = vsub.s32 0, %v282
          %v284 = vrot.slane %v279, %v283
          %286 = vst [vmem:[#allocation2] sm:$0xff] %v284
          %287 = vst [vmem:[#allocation2 + $0x8] sm:$0xff] %v284
          %288 = vst [vmem:[#allocation2 + $0x10] sm:$0xff] %v284
          %289 = vst [vmem:[#allocation2 + $0x18] sm:$0xff] %v284
          %290 = vst [vmem:[#allocation2 + $0x20] sm:$0xff] %v284
          %291 = vst [vmem:[#allocation2 + $0x28] sm:$0xff] %v284
          %292 = vst [vmem:[#allocation2 + $0x30] sm:$0xff] %v284
          %293 = vst [vmem:[#allocation2 + $0x38] sm:$0xff] %v284
          %294 = vst [vmem:[#allocation2 + $0x40] sm:$0xff] %v284
          %295 = vst [vmem:[#allocation2 + $0x48] sm:$0xff] %v284
          %296 = vst [vmem:[#allocation2 + $0x50] sm:$0xff] %v284
          %297 = vst [vmem:[#allocation2 + $0x58] sm:$0xff] %v284
          %298 = vst [vmem:[#allocation2 + $0x60] sm:$0xff] %v284
          %299 = vst [vmem:[#allocation2 + $0x68] sm:$0xff] %v284
          %300 = vst [vmem:[#allocation2 + $0x70] sm:$0xff] %v284
          %301 = vst [vmem:[#allocation2 + $0x78] sm:$0xff] %v284
        $region44: #{tpu_custom_call.1} parent=31 // pred_fallthru
          _
        %v302 = vld [vmem:[%s228] sm:$0xff]
        %v303 = vld [vmem:[%s228 + $0x8] sm:$0xff]
        %v304 = vld [vmem:[%s228 + $0x10] sm:$0xff]
        %v305 = vld [vmem:[%s228 + $0x18] sm:$0xff]
        %v306 = vld [vmem:[%s228 + $0x20] sm:$0xff]
        %v307 = vld [vmem:[%s228 + $0x28] sm:$0xff]
        %v308 = vld [vmem:[%s228 + $0x30] sm:$0xff]
        %v309 = vld [vmem:[%s228 + $0x38] sm:$0xff]
        %v310 = vld [vmem:[%s228 + $0x40] sm:$0xff]
        %v311 = vld [vmem:[%s228 + $0x48] sm:$0xff]
        %v312 = vld [vmem:[%s228 + $0x50] sm:$0xff]
        %v313 = vld [vmem:[%s228 + $0x58] sm:$0xff]
        %v314 = vld [vmem:[%s228 + $0x60] sm:$0xff]
        %v315 = vld [vmem:[%s228 + $0x68] sm:$0xff]
        %v316 = vld [vmem:[%s228 + $0x70] sm:$0xff]
        %v317 = vld [vmem:[%s228 + $0x78] sm:$0xff]
        %v318 = vpack.c.bf16 %v303, %v302
        %v319 = vpack.c.bf16 %v305, %v304
        %v320 = vpack.c.bf16 %v307, %v306
        %v321 = vpack.c.bf16 %v309, %v308
        %v322 = vpack.c.bf16 %v311, %v310
        %v323 = vpack.c.bf16 %v313, %v312
        %v324 = vpack.c.bf16 %v315, %v314
        %v325 = vpack.c.bf16 %v317, %v316
        %v326 = vld [vmem:[%s237] sm:$0xf]
        %v327 = vld [vmem:[%s237 + $0x4] sm:$0xf]
        %v328 = vld [vmem:[%s237 + $0x8] sm:$0xf]
        %v329 = vld [vmem:[%s237 + $0xc] sm:$0xf]
        %v330 = vld [vmem:[%s237 + $0x10] sm:$0xf]
        %v331 = vld [vmem:[%s237 + $0x14] sm:$0xf]
        %v332 = vld [vmem:[%s237 + $0x18] sm:$0xf]
        %v333 = vld [vmem:[%s237 + $0x1c] sm:$0xf]
        %v334 = vld [vmem:[%s237 + $0x20] sm:$0xf]
        %v335 = vld [vmem:[%s237 + $0x24] sm:$0xf]
        %v336 = vld [vmem:[%s237 + $0x28] sm:$0xf]
        %v337 = vld [vmem:[%s237 + $0x2c] sm:$0xf]
        %v338 = vld [vmem:[%s237 + $0x30] sm:$0xf]
        %v339 = vld [vmem:[%s237 + $0x34] sm:$0xf]
        %v340 = vld [vmem:[%s237 + $0x38] sm:$0xf]
        %v341 = vld [vmem:[%s237 + $0x3c] sm:$0xf]
        %v342 = vld [vmem:[#allocation2] sm:$0xff]
        %v343 = vld [vmem:[#allocation2 + $0x8] sm:$0xff]
        %v344 = vld [vmem:[#allocation2 + $0x10] sm:$0xff]
        %v345 = vld [vmem:[#allocation2 + $0x18] sm:$0xff]
        %v346 = vld [vmem:[#allocation2 + $0x20] sm:$0xff]
        %v347 = vld [vmem:[#allocation2 + $0x28] sm:$0xff]
        %v348 = vld [vmem:[#allocation2 + $0x30] sm:$0xff]
        %v349 = vld [vmem:[#allocation2 + $0x38] sm:$0xff]
        %v350 = vld [vmem:[#allocation2 + $0x40] sm:$0xff]
        %v351 = vld [vmem:[#allocation2 + $0x48] sm:$0xff]
        %v352 = vld [vmem:[#allocation2 + $0x50] sm:$0xff]
        %v353 = vld [vmem:[#allocation2 + $0x58] sm:$0xff]
        %v354 = vld [vmem:[#allocation2 + $0x60] sm:$0xff]
        %v355 = vld [vmem:[#allocation2 + $0x68] sm:$0xff]
        %v356 = vld [vmem:[#allocation2 + $0x70] sm:$0xff]
        %v357 = vld [vmem:[#allocation2 + $0x78] sm:$0xff]
        %v374 = vunpack.c.l.b16 %v326
        %v375 = vunpack.c.l.b16 %v327
        %v376 = vunpack.c.l.b16 %v328
        %v377 = vunpack.c.l.b16 %v329
        %v378 = vunpack.c.l.b16 %v330
        %v379 = vunpack.c.l.b16 %v331
        %v380 = vunpack.c.l.b16 %v332
        %v381 = vunpack.c.l.b16 %v333
        %v382 = vunpack.c.l.b16 %v334
        %v383 = vunpack.c.l.b16 %v335
        %v384 = vunpack.c.l.b16 %v336
        %v385 = vunpack.c.l.b16 %v337
        %v386 = vunpack.c.l.b16 %v338
        %v387 = vunpack.c.l.b16 %v339
        %v388 = vunpack.c.l.b16 %v340
        %v389 = vunpack.c.l.b16 %v341
        %v390 = vpack.c.b16 %v375, %v374
        %v391 = vpack.c.b16 %v377, %v376
        %v392 = vpack.c.b16 %v379, %v378
        %v393 = vpack.c.b16 %v381, %v380
        %v394 = vpack.c.b16 %v383, %v382
        %v395 = vpack.c.b16 %v385, %v384
        %v396 = vpack.c.b16 %v387, %v386
        %v397 = vpack.c.b16 %v389, %v388
        %406 = vmatprep.subr.bf16.mxu0 0
        %407 = vmatpush1.bf16.msra.mxu0 %v390
        %408 = vmatprep.subr.bf16.mxu0 0
        %409 = vmatpush1.bf16.msra.mxu0 %v391
        %410 = vmatprep.subr.bf16.mxu0 0
        %411 = vmatpush1.bf16.msra.mxu0 %v392
        %412 = vmatprep.subr.bf16.mxu0 0
        %413 = vmatpush1.bf16.msra.mxu0 %v393
        %414 = vmatprep.subr.bf16.mxu0 0
        %415 = vmatpush1.bf16.msra.mxu0 %v394
        %416 = vmatprep.subr.bf16.mxu0 0
        %417 = vmatpush1.bf16.msra.mxu0 %v395
        %418 = vmatprep.subr.bf16.mxu0 0
        %419 = vmatpush1.bf16.msra.mxu0 %v396
        %420 = vmatprep.subr.bf16.mxu0 0
        %421 = vmatpush1.bf16.msra.mxu0 %v397
        %422 = vmatprep.subr.bf16.mxu0 0
        %423 = vmatpush1.bf16.msra.mxu0 0
        %424 = vmatprep.subr.bf16.mxu0 0
        %425 = vmatpush1.bf16.msra.mxu0 0
        %426 = vmatprep.subr.bf16.mxu0 0
        %427 = vmatpush1.bf16.msra.mxu0 0
        %428 = vmatprep.subr.bf16.mxu0 0
        %429 = vmatpush1.bf16.msra.mxu0 0
        %430 = vmatprep.subr.bf16.mxu0 0
        %431 = vmatpush1.bf16.msra.mxu0 0
        %432 = vmatprep.subr.bf16.mxu0 0
        %433 = vmatpush1.bf16.msra.mxu0 0
        %434 = vmatprep.subr.bf16.mxu0 0
        %435 = vmatpush1.bf16.msra.mxu0 0
        %436 = vmatprep.subr.bf16.mxu0 0
        %437 = vmatpush1.bf16.msra.mxu0 0
        %438 = vmatprep.mubr.bf16.mxu0 0
        %439 = vmatmul.mubr.bf16.gmra.mrb[0].mxu0 %v318
        %v440 = vpop.f32.mrb[0].mxu0
        %v441 = vadd.f32 0.0, %v440
        %v442 = vpop.f32.mrb[0].mxu0
        %v443 = vpop.f32.mrb[0].mxu0
        %v444 = vadd.f32 0.0, %v443
        %v445 = vpop.f32.mrb[0].mxu0
        %446 = vmatprep.mubr.bf16.mxu0 0
        %447 = vmatmul.mubr.bf16.gmra.mrb[0].mxu0 %v319
        %v448 = vpop.f32.mrb[0].mxu0
        %v449 = vadd.f32 0.0, %v448
        %v450 = vpop.f32.mrb[0].mxu0
        %v451 = vpop.f32.mrb[0].mxu0
        %v452 = vadd.f32 0.0, %v451
        %v453 = vpop.f32.mrb[0].mxu0
        %454 = vmatprep.mubr.bf16.mxu0 0
        %455 = vmatmul.mubr.bf16.gmra.mrb[0].mxu0 %v320
        %v456 = vpop.f32.mrb[0].mxu0
        %v457 = vadd.f32 0.0, %v456
        %v458 = vpop.f32.mrb[0].mxu0
        %v459 = vpop.f32.mrb[0].mxu0
        %v460 = vadd.f32 0.0, %v459
        %v461 = vpop.f32.mrb[0].mxu0
        %462 = vmatprep.mubr.bf16.mxu0 0
        %463 = vmatmul.mubr.bf16.gmra.mrb[0].mxu0 %v321
        %v464 = vpop.f32.mrb[0].mxu0
        %v465 = vadd.f32 0.0, %v464
        %v466 = vpop.f32.mrb[0].mxu0
        %v467 = vpop.f32.mrb[0].mxu0
        %v468 = vadd.f32 0.0, %v467
        %v469 = vpop.f32.mrb[0].mxu0
        %470 = vmatprep.mubr.bf16.mxu0 0
        %471 = vmatmul.mubr.bf16.gmra.mrb[0].mxu0 %v322
        %v472 = vpop.f32.mrb[0].mxu0
        %v473 = vadd.f32 0.0, %v472
        %v474 = vpop.f32.mrb[0].mxu0
        %v475 = vpop.f32.mrb[0].mxu0
        %v476 = vadd.f32 0.0, %v475
        %v477 = vpop.f32.mrb[0].mxu0
        %478 = vmatprep.mubr.bf16.mxu0 0
        %479 = vmatmul.mubr.bf16.gmra.mrb[0].mxu0 %v323
        %v480 = vpop.f32.mrb[0].mxu0
        %v481 = vadd.f32 0.0, %v480
        %v482 = vpop.f32.mrb[0].mxu0
        %v483 = vpop.f32.mrb[0].mxu0
        %v484 = vadd.f32 0.0, %v483
        %v485 = vpop.f32.mrb[0].mxu0
        %486 = vmatprep.mubr.bf16.mxu0 0
        %487 = vmatmul.mubr.bf16.gmra.mrb[0].mxu0 %v324
        %v488 = vpop.f32.mrb[0].mxu0
        %v489 = vadd.f32 0.0, %v488
        %v490 = vpop.f32.mrb[0].mxu0
        %v491 = vpop.f32.mrb[0].mxu0
        %v492 = vadd.f32 0.0, %v491
        %v493 = vpop.f32.mrb[0].mxu0
        %494 = vmatprep.mubr.bf16.mxu0 0
        %495 = vmatmul.mubr.bf16.gmra.mrb[0].mxu0 %v325
        %v496 = vpop.f32.mrb[0].mxu0
        %v497 = vadd.f32 0.0, %v496
        %v498 = vpop.f32.mrb[0].mxu0
        %v499 = vpop.f32.mrb[0].mxu0
        %v500 = vadd.f32 0.0, %v499
        %v501 = vpop.f32.mrb[0].mxu0
        %502 = vdwg.mxu0
        %v503 = vadd.f32 %v342, %v441
        %v504 = vadd.f32 %v343, %v444
        %v505 = vadd.f32 %v344, %v449
        %v506 = vadd.f32 %v345, %v452
        %v507 = vadd.f32 %v346, %v457
        %v508 = vadd.f32 %v347, %v460
        %v509 = vadd.f32 %v348, %v465
        %v510 = vadd.f32 %v349, %v468
        %v511 = vadd.f32 %v350, %v473
        %v512 = vadd.f32 %v351, %v476
        %v513 = vadd.f32 %v352, %v481
        %v514 = vadd.f32 %v353, %v484
        %v515 = vadd.f32 %v354, %v489
        %v516 = vadd.f32 %v355, %v492
        %v517 = vadd.f32 %v356, %v497
        %v518 = vadd.f32 %v357, %v500
        %519 = vst [vmem:[#allocation2] sm:$0xff] %v503
        %520 = vst [vmem:[#allocation2 + $0x8] sm:$0xff] %v504
        %521 = vst [vmem:[#allocation2 + $0x10] sm:$0xff] %v505
        %522 = vst [vmem:[#allocation2 + $0x18] sm:$0xff] %v506
        %523 = vst [vmem:[#allocation2 + $0x20] sm:$0xff] %v507
        %524 = vst [vmem:[#allocation2 + $0x28] sm:$0xff] %v508
        %525 = vst [vmem:[#allocation2 + $0x30] sm:$0xff] %v509
        %526 = vst [vmem:[#allocation2 + $0x38] sm:$0xff] %v510
        %527 = vst [vmem:[#allocation2 + $0x40] sm:$0xff] %v511
        %528 = vst [vmem:[#allocation2 + $0x48] sm:$0xff] %v512
        %529 = vst [vmem:[#allocation2 + $0x50] sm:$0xff] %v513
        %530 = vst [vmem:[#allocation2 + $0x58] sm:$0xff] %v514
        %531 = vst [vmem:[#allocation2 + $0x60] sm:$0xff] %v515
        %532 = vst [vmem:[#allocation2 + $0x68] sm:$0xff] %v516
        %533 = vst [vmem:[#allocation2 + $0x70] sm:$0xff] %v517
        %534 = vst [vmem:[#allocation2 + $0x78] sm:$0xff] %v518
        // Predicated region
        $region45: #{tpu_custom_call.1} parent=31 // pred_check
          %p535 = pneg %p275
        $region46: #{tpu_custom_call.1} parent=31 // pred_check_branch
          %537 = sbr.rel (%p535) target = $region48
        $region47: #{tpu_custom_call.1} parent=31 // pred_region
          %v538 = vld [vmem:[#allocation2] sm:$0xff]
          %v539 = vld [vmem:[#allocation2 + $0x8] sm:$0xff]
          %v540 = vld [vmem:[#allocation2 + $0x10] sm:$0xff]
          %v541 = vld [vmem:[#allocation2 + $0x18] sm:$0xff]
          %v542 = vld [vmem:[#allocation2 + $0x20] sm:$0xff]
          %v543 = vld [vmem:[#allocation2 + $0x28] sm:$0xff]
          %v544 = vld [vmem:[#allocation2 + $0x30] sm:$0xff]
          %v545 = vld [vmem:[#allocation2 + $0x38] sm:$0xff]
          %v546 = vld [vmem:[#allocation2 + $0x40] sm:$0xff]
          %v547 = vld [vmem:[#allocation2 + $0x48] sm:$0xff]
          %v548 = vld [vmem:[#allocation2 + $0x50] sm:$0xff]
          %v549 = vld [vmem:[#allocation2 + $0x58] sm:$0xff]
          %v550 = vld [vmem:[#allocation2 + $0x60] sm:$0xff]
          %v551 = vld [vmem:[#allocation2 + $0x68] sm:$0xff]
          %v552 = vld [vmem:[#allocation2 + $0x70] sm:$0xff]
          %v553 = vld [vmem:[#allocation2 + $0x78] sm:$0xff]
          %554 = vst [vmem:[%s267] sm:$0xff] %v538
          %555 = vst [vmem:[%s267 + $0x8] sm:$0xff] %v539
          %556 = vst [vmem:[%s267 + $0x10] sm:$0xff] %v540
          %557 = vst [vmem:[%s267 + $0x18] sm:$0xff] %v541
          %558 = vst [vmem:[%s267 + $0x20] sm:$0xff] %v542
          %559 = vst [vmem:[%s267 + $0x28] sm:$0xff] %v543
          %560 = vst [vmem:[%s267 + $0x30] sm:$0xff] %v544
          %561 = vst [vmem:[%s267 + $0x38] sm:$0xff] %v545
          %562 = vst [vmem:[%s267 + $0x40] sm:$0xff] %v546
          %563 = vst [vmem:[%s267 + $0x48] sm:$0xff] %v547
          %564 = vst [vmem:[%s267 + $0x50] sm:$0xff] %v548
          %565 = vst [vmem:[%s267 + $0x58] sm:$0xff] %v549
          %566 = vst [vmem:[%s267 + $0x60] sm:$0xff] %v550
          %567 = vst [vmem:[%s267 + $0x68] sm:$0xff] %v551
          %568 = vst [vmem:[%s267 + $0x70] sm:$0xff] %v552
          %569 = vst [vmem:[%s267 + $0x78] sm:$0xff] %v553
        $region48: #{tpu_custom_call.1} parent=31 // pred_fallthru
          _
        %s570 = sand.u32 %s134, 1
        %s571 = scalar_lea.sflag [#allocation5], %s570
        %s572 = sand.u32 %s134, 1
        %s573 = smul.addr %s572, 128
        %s574 = scalar_lea.vmem [#allocation8], %s573
        // Predicated region
        $region49: #{tpu_custom_call.1} parent=31 // pred_check
          %p575 = pneg %p144
        $region50: #{tpu_custom_call.1} parent=31 // pred_check_branch
          %577 = sbr.rel (%p575) target = $region52
        $region51: #{tpu_custom_call.1} parent=31 // pred_region
          %s578 = smul.u32 16, %s28
          %s580 = ssub.s32 2048, 2048
          %581 = vsyncadd %s571, %s580
          %s582 = smul.addr %s29, 32
          %s583 = sadd.s32 %s578, %s582
          %s584 = smul.addr %s583, 128
          %s585 = scalar_lea.hbm %s3, %s584
          %s586 = sshll.u32 %s574, 4
          %s587 = int_to_ptr.vmem [resolvable:$true] %s586
          %592 = dma.vmem_to_hbm [thread:$0]  %s587, 2048, %s585, %s571, 128, 128, 8
        $region52: #{tpu_custom_call.1} parent=31 // pred_fallthru
          _
      $region32: #{tpu_custom_call.1} parent=5 // pred_fallthru
        _
      %p593 = scmp.le.s32.totalorder 2, %s18
      // Predicated region
      $region53: #{tpu_custom_call.1} parent=5 // pred_check
        %p594 = pneg %p593
      $region54: #{tpu_custom_call.1} parent=5 // pred_check_branch
        %596 = sbr.rel (%p594) target = $region56
      $region55: #{tpu_custom_call.1} parent=5 // pred_region
        %s597 = ssub.s32 %s18, 2
        // Predicated region
        $region57: #{tpu_custom_call.1} parent=55 // pred_check
          %p598 = pneg %p150
        $region58: #{tpu_custom_call.1} parent=55 // pred_check_branch
          %600 = sbr.rel (%p598) target = $region60
        $region59: #{tpu_custom_call.1} parent=55 // pred_region
          %s601 = sand.u32 %s135, 1
          %s602 = scalar_lea.sflag [#allocation5], %s601
          %s603 = sand.u32 %s135, 1
          %s604 = smul.addr %s603, 128
          %s605 = scalar_lea.vmem [#allocation8], %s604
          %606 = dma.done %s602, 2048
        $region60: #{tpu_custom_call.1} parent=55 // pred_fallthru
          _
      $region56: #{tpu_custom_call.1} parent=5 // pred_fallthru
        _
    $region6: #{tpu_custom_call.1} parent=1 // loop_footer
      %s22 = sadd.s32 1, %s18
    $region7: #{tpu_custom_call.1} parent=1 // loop_footer_branch
      %17 = sbr.rel target = $region3
    $region8: #{tpu_custom_call.1} parent=1 // loop_exit
      _
    %607 = vsyncpa [#allocation4], 1
    %s608 = scalar_lea.sflag [#allocation4], 1
    %609 = vsyncpa %s608, 1
    %610 = vsyncpa [#allocation7], 1
    %s611 = scalar_lea.sflag [#allocation7], 1
    %612 = vsyncpa %s611, 1
    %613 = vsyncpa [#allocation5], 1
    %s614 = scalar_lea.sflag [#allocation5], 1
    %615 = vsyncpa %s614, 1

</llo_original>
